<compile_context>
chip_gen: v7x
topology: tpu7x:2x2x1
jax: 0.10.0
libtpu: 0.0.40
codegen_flags: <defaults>
</compile_context>

<pallas_src>
import functools

import jax
import jax.numpy as jnp
import numpy as np
from jax.experimental import pallas as pl
from jax.experimental.pallas import tpu as pltpu


def qattn_kernel(x_ref, q_ref, wkv_ref, wp_ref, bp_ref, o_ref, *,
                 num_heads, head_dim, scale):
    """Fused K/V projection + multi-head attention + output projection.

    x_ref:   [1, N, C]   key/value source tokens (one batch element)
    q_ref:   [1, M, C]   query tokens (y, already flattened + transposed)
    wkv_ref: [C, 2C]     concat(Wk^T, Wv^T)  — single MXU weight slab
    wp_ref:  [C, C]      Wproj^T
    bp_ref:  [1, C]      proj bias
    o_ref:   [1, M, C]
    """
    x = x_ref[0]                       # (N, C)
    q = q_ref[0]                       # (M, C)
    c = x.shape[-1]

    # One lane-dense matmul produces both projections: (N, 2C).
    kv = jnp.dot(x, wkv_ref[...], preferred_element_type=jnp.float32)
    k = kv[:, :c]                      # (N, C)
    v = kv[:, c:]                      # (N, C)

    head_outs = []
    for h in range(num_heads):         # static loop (num_heads = 2)
        sl = slice(h * head_dim, (h + 1) * head_dim)
        qh = q[:, sl]                  # (M, hd)
        kh = k[:, sl]                  # (N, hd)
        vh = v[:, sl]                  # (N, hd)

        s = jnp.dot(qh, kh.T, preferred_element_type=jnp.float32) * scale  # (M, N)
        s = s - jnp.max(s, axis=-1, keepdims=True)
        p = jnp.exp(s)
        p = p / jnp.sum(p, axis=-1, keepdims=True)                          # softmax
        head_outs.append(jnp.dot(p, vh, preferred_element_type=jnp.float32))

    attn_out = jnp.concatenate(head_outs, axis=-1)        # (M, C) heads merged

    y = jnp.dot(attn_out, wp_ref[...], preferred_element_type=jnp.float32)
    y = y + bp_ref[...]
    o_ref[0] = y.astype(o_ref.dtype)


def query_attention_forward(x, y, params, *, num_heads):
    """x: (B, N, C) float32; y: (B, C, H, W) float32 -> (B, H*W, C)."""
    wk, wv, wp, bp = params            # weights already in (in, out) layout
    B, N, C = x.shape
    head_dim = C // num_heads
    scale = head_dim ** -0.5

    # Pure data-movement glue: y.flatten(2).transpose(1, 2)  ->  (B, M, C).
    q = jnp.transpose(y.reshape(B, C, -1), (0, 2, 1))
    M = q.shape[1]
    wkv = jnp.concatenate([wk, wv], axis=1)               # (C, 2C)

    kernel = functools.partial(qattn_kernel, num_heads=num_heads,
                               head_dim=head_dim, scale=scale)
    return pl.pallas_call(
        kernel,
        out_shape=jax.ShapeDtypeStruct((B, M, C), jnp.float32),
        grid_spec=pltpu.PrefetchScalarGridSpec(
            num_scalar_prefetch=0,
            grid=(B,),
            in_specs=[
                pl.BlockSpec((1, N, C), lambda b: (b, 0, 0)),
                pl.BlockSpec((1, M, C), lambda b: (b, 0, 0)),
                pl.BlockSpec((C, 2 * C), lambda b: (0, 0)),
                pl.BlockSpec((C, C), lambda b: (0, 0)),
                pl.BlockSpec((1, C), lambda b: (0, 0)),
            ],
            out_specs=pl.BlockSpec((1, M, C), lambda b: (b, 0, 0)),
        ),
        compiler_params=pltpu.CompilerParams(
            dimension_semantics=("parallel",)),
    )(x, q, wkv, wp, bp.reshape(1, -1))


def _reference(x, y, params, *, num_heads):
    """Pure-JAX reference mirroring the PyTorch forward."""
    wk, wv, wp, bp = params
    B, N, C = x.shape
    hd = C // num_heads
    scale = hd ** -0.5

    k = (x @ wk).reshape(B, N, num_heads, hd).transpose(0, 2, 1, 3)
    v = (x @ wv).reshape(B, N, num_heads, hd).transpose(0, 2, 1, 3)
    q = jnp.transpose(y.reshape(B, C, -1), (0, 2, 1))
    M = q.shape[1]
    q = q.reshape(B, M, num_heads, hd).transpose(0, 2, 1, 3)

    attn = jnp.einsum("bhmd,bhnd->bhmn", q, k) * scale
    attn = jax.nn.softmax(attn, axis=-1)
    out = jnp.einsum("bhmn,bhnd->bhmd", attn, v)
    out = out.transpose(0, 2, 1, 3).reshape(B, M, C)
    return out @ wp + bp


if __name__ == "__main__":
    dim, num_heads = 32, 2
    B, N = 2, 8            # x: (B, N, dim) token sequence for keys/values
    H = W = 3              # y: (B, dim, 3, 3) -> 9 queries (matches self.q's 9)

    key = jax.random.PRNGKey(0)
    ks = jax.random.split(key, 6)
    x = jax.random.normal(ks[0], (B, N, dim), jnp.float32)
    y = jax.random.normal(ks[1], (B, dim, H, W), jnp.float32)

    # nn.Linear weights are (out, in); we hold W^T, i.e. (in, out).  qkv_bias=False.
    wk = 0.1 * jax.random.normal(ks[2], (dim, dim), jnp.float32)
    wv = 0.1 * jax.random.normal(ks[3], (dim, dim), jnp.float32)
    wp = 0.1 * jax.random.normal(ks[4], (dim, dim), jnp.float32)
    bp = 0.1 * jax.random.normal(ks[5], (dim,), jnp.float32)
    params = (wk, wv, wp, bp)

    fwd = jax.jit(functools.partial(query_attention_forward, num_heads=num_heads))
    out = jax.block_until_ready(fwd(x, y, params))
    assert out.shape == (B, H * W, dim), out.shape

    ref = _reference(x, y, params, num_heads=num_heads)
    np.testing.assert_allclose(np.asarray(out), np.asarray(ref),
                               rtol=2e-3, atol=2e-3)
    print("KERNEL_OK")
</pallas_src>

<mosaic_0001>
module attributes {stable_mosaic.version = 11 : i64} {
  func.func @qattn_kernel(%arg0: i32, %arg1: memref<1x8x32xf32, #tpu.memory_space<vmem>>, %arg2: memref<1x9x32xf32, #tpu.memory_space<vmem>>, %arg3: memref<32x64xf32, #tpu.memory_space<vmem>>, %arg4: memref<32x32xf32, #tpu.memory_space<vmem>>, %arg5: memref<1x32xf32, #tpu.memory_space<vmem>>, %arg6: memref<1x9x32xf32, #tpu.memory_space<vmem>>) attributes {dimension_semantics = [#tpu.dimension_semantics<parallel>], iteration_bounds = array<i64: 2>, scalar_prefetch = 0 : i64, scratch_operands = 0 : i64, tpu.core_type = #tpu.core_type<tc>, window_params = [{transform_indices = @transform_0, window_bounds = array<i64: 1, 8, 32>}, {transform_indices = @transform_1, window_bounds = array<i64: 1, 9, 32>}, {pipeline_mode = #tpu.pipeline_mode<synchronous>, transform_indices = @transform_2, window_bounds = array<i64: 32, 64>}, {pipeline_mode = #tpu.pipeline_mode<synchronous>, transform_indices = @transform_3, window_bounds = array<i64: 32, 32>}, {pipeline_mode = #tpu.pipeline_mode<synchronous>, transform_indices = @transform_4, window_bounds = array<i64: 1, 32>}, {transform_indices = @transform_5, window_bounds = array<i64: 1, 9, 32>}]} {
    %c0 = arith.constant 0 : index
    %c0_0 = arith.constant 0 : index
    %c0_1 = arith.constant 0 : index
    %0 = vector.load %arg1[%c0, %c0_0, %c0_1] : memref<1x8x32xf32, #tpu.memory_space<vmem>>, vector<1x8x32xf32>
    %1 = vector.shape_cast %0 : vector<1x8x32xf32> to vector<8x32xf32>
    %c0_2 = arith.constant 0 : index
    %c0_3 = arith.constant 0 : index
    %c0_4 = arith.constant 0 : index
    %2 = vector.load %arg2[%c0_2, %c0_3, %c0_4] : memref<1x9x32xf32, #tpu.memory_space<vmem>>, vector<1x9x32xf32>
    %3 = vector.shape_cast %2 : vector<1x9x32xf32> to vector<9x32xf32>
    %c0_5 = arith.constant 0 : index
    %c0_6 = arith.constant 0 : index
    %4 = vector.load %arg3[%c0_5, %c0_6] : memref<32x64xf32, #tpu.memory_space<vmem>>, vector<32x64xf32>
    %cst = arith.constant dense<0.000000e+00> : vector<8x64xf32>
    %5 = tpu.matmul %1, %4, %cst {dimension_numbers = #tpu.dot_dimension_numbers<[1], [0], [0], [1], [0, 0, 1, 1], [], []>} : vector<8x32xf32>, vector<32x64xf32>, vector<8x64xf32> -> vector<8x64xf32>
    %6 = vector.extract_strided_slice %5 {offsets = [0, 0], sizes = [8, 32], strides = [1, 1]} : vector<8x64xf32> to vector<8x32xf32>
    %7 = vector.extract_strided_slice %5 {offsets = [0, 32], sizes = [8, 32], strides = [1, 1]} : vector<8x64xf32> to vector<8x32xf32>
    %8 = vector.extract_strided_slice %3 {offsets = [0, 0], sizes = [9, 16], strides = [1, 1]} : vector<9x32xf32> to vector<9x16xf32>
    %9 = vector.extract_strided_slice %6 {offsets = [0, 0], sizes = [8, 16], strides = [1, 1]} : vector<8x32xf32> to vector<8x16xf32>
    %10 = vector.extract_strided_slice %7 {offsets = [0, 0], sizes = [8, 16], strides = [1, 1]} : vector<8x32xf32> to vector<8x16xf32>
    %11 = tpu.transpose %9, [1, 0] : vector<8x16xf32> -> vector<16x8xf32>
    %cst_7 = arith.constant dense<0.000000e+00> : vector<9x8xf32>
    %12 = tpu.matmul %8, %11, %cst_7 {dimension_numbers = #tpu.dot_dimension_numbers<[1], [0], [0], [1], [0, 0, 1, 1], [], []>} : vector<9x16xf32>, vector<16x8xf32>, vector<9x8xf32> -> vector<9x8xf32>
    %cst_8 = arith.constant 2.500000e-01 : f32
    %13 = vector.broadcast %cst_8 : f32 to vector<9x8xf32>
    %14 = arith.mulf %12, %13 : vector<9x8xf32>
    %cst_9 = arith.constant dense<0xFF800000> : vector<9xf32>
    %15 = vector.multi_reduction <maximumf>, %14, %cst_9 [1] : vector<9x8xf32> to vector<9xf32>
    %16 = vector.shape_cast %15 : vector<9xf32> to vector<9x1xf32>
    %17 = vector.broadcast %16 : vector<9x1xf32> to vector<9x8xf32>
    %18 = arith.subf %14, %17 : vector<9x8xf32>
    %19 = math.exp %18 : vector<9x8xf32>
    %cst_10 = arith.constant dense<0.000000e+00> : vector<9xf32>
    %20 = vector.multi_reduction <add>, %19, %cst_10 [1] : vector<9x8xf32> to vector<9xf32>
    %21 = vector.shape_cast %20 : vector<9xf32> to vector<9x1xf32>
    %22 = vector.broadcast %21 : vector<9x1xf32> to vector<9x8xf32>
    %23 = arith.divf %19, %22 : vector<9x8xf32>
    %cst_11 = arith.constant dense<0.000000e+00> : vector<9x16xf32>
    %24 = tpu.matmul %23, %10, %cst_11 {dimension_numbers = #tpu.dot_dimension_numbers<[1], [0], [0], [1], [0, 0, 1, 1], [], []>} : vector<9x8xf32>, vector<8x16xf32>, vector<9x16xf32> -> vector<9x16xf32>
    %25 = vector.extract_strided_slice %3 {offsets = [0, 16], sizes = [9, 16], strides = [1, 1]} : vector<9x32xf32> to vector<9x16xf32>
    %26 = vector.extract_strided_slice %6 {offsets = [0, 16], sizes = [8, 16], strides = [1, 1]} : vector<8x32xf32> to vector<8x16xf32>
    %27 = vector.extract_strided_slice %7 {offsets = [0, 16], sizes = [8, 16], strides = [1, 1]} : vector<8x32xf32> to vector<8x16xf32>
    %28 = tpu.transpose %26, [1, 0] : vector<8x16xf32> -> vector<16x8xf32>
    %cst_12 = arith.constant dense<0.000000e+00> : vector<9x8xf32>
    %29 = tpu.matmul %25, %28, %cst_12 {dimension_numbers = #tpu.dot_dimension_numbers<[1], [0], [0], [1], [0, 0, 1, 1], [], []>} : vector<9x16xf32>, vector<16x8xf32>, vector<9x8xf32> -> vector<9x8xf32>
    %cst_13 = arith.constant 2.500000e-01 : f32
    %30 = vector.broadcast %cst_13 : f32 to vector<9x8xf32>
    %31 = arith.mulf %29, %30 : vector<9x8xf32>
    %cst_14 = arith.constant dense<0xFF800000> : vector<9xf32>
    %32 = vector.multi_reduction <maximumf>, %31, %cst_14 [1] : vector<9x8xf32> to vector<9xf32>
    %33 = vector.shape_cast %32 : vector<9xf32> to vector<9x1xf32>
    %34 = vector.broadcast %33 : vector<9x1xf32> to vector<9x8xf32>
    %35 = arith.subf %31, %34 : vector<9x8xf32>
    %36 = math.exp %35 : vector<9x8xf32>
    %cst_15 = arith.constant dense<0.000000e+00> : vector<9xf32>
    %37 = vector.multi_reduction <add>, %36, %cst_15 [1] : vector<9x8xf32> to vector<9xf32>
    %38 = vector.shape_cast %37 : vector<9xf32> to vector<9x1xf32>
    %39 = vector.broadcast %38 : vector<9x1xf32> to vector<9x8xf32>
    %40 = arith.divf %36, %39 : vector<9x8xf32>
    %cst_16 = arith.constant dense<0.000000e+00> : vector<9x16xf32>
    %41 = tpu.matmul %40, %27, %cst_16 {dimension_numbers = #tpu.dot_dimension_numbers<[1], [0], [0], [1], [0, 0, 1, 1], [], []>} : vector<9x8xf32>, vector<8x16xf32>, vector<9x16xf32> -> vector<9x16xf32>
    %42 = tpu.concatenate %24, %41 in 1 : vector<9x16xf32>, vector<9x16xf32> -> vector<9x32xf32>
    %c0_17 = arith.constant 0 : index
    %c0_18 = arith.constant 0 : index
    %43 = vector.load %arg4[%c0_17, %c0_18] : memref<32x32xf32, #tpu.memory_space<vmem>>, vector<32x32xf32>
    %cst_19 = arith.constant dense<0.000000e+00> : vector<9x32xf32>
    %44 = tpu.matmul %42, %43, %cst_19 {dimension_numbers = #tpu.dot_dimension_numbers<[1], [0], [0], [1], [0, 0, 1, 1], [], []>} : vector<9x32xf32>, vector<32x32xf32>, vector<9x32xf32> -> vector<9x32xf32>
    %c0_20 = arith.constant 0 : index
    %c0_21 = arith.constant 0 : index
    %45 = vector.load %arg5[%c0_20, %c0_21] : memref<1x32xf32, #tpu.memory_space<vmem>>, vector<1x32xf32>
    %46 = vector.broadcast %45 : vector<1x32xf32> to vector<9x32xf32>
    %47 = arith.addf %44, %46 : vector<9x32xf32>
    %c0_22 = arith.constant 0 : index
    %c0_23 = arith.constant 0 : index
    %c0_24 = arith.constant 0 : index
    %48 = vector.load %arg6[%c0_22, %c0_23, %c0_24] : memref<1x9x32xf32, #tpu.memory_space<vmem>>, vector<1x9x32xf32>
    %49 = vector.shape_cast %48 : vector<1x9x32xf32> to vector<9x32xf32>
    %50 = vector.shape_cast %47 : vector<9x32xf32> to vector<1x9x32xf32>
    tpu.vector_store %arg6[%c0_22, %c0_23, %c0_24], %50 {strides = array<i32>} : memref<1x9x32xf32, #tpu.memory_space<vmem>>, vector<1x9x32xf32>,
    return
  }
  func.func @transform_0(%arg0: i32) -> (i32, i32, i32) {
    %c0_i32 = arith.constant 0 : i32
    %c0_i32_0 = arith.constant 0 : i32
    %c0_i32_1 = arith.constant 0 : i32
    return %arg0, %c0_i32, %c0_i32_0 : i32, i32, i32
  }
  func.func @transform_1(%arg0: i32) -> (i32, i32, i32) {
    %c0_i32 = arith.constant 0 : i32
    %c0_i32_0 = arith.constant 0 : i32
    %c0_i32_1 = arith.constant 0 : i32
    return %arg0, %c0_i32, %c0_i32_0 : i32, i32, i32
  }
  func.func @transform_2(%arg0: i32) -> (i32, i32) {
    %c0_i32 = arith.constant 0 : i32
    %c0_i32_0 = arith.constant 0 : i32
    %c0_i32_1 = arith.constant 0 : i32
    return %c0_i32, %c0_i32_0 : i32, i32
  }
  func.func @transform_3(%arg0: i32) -> (i32, i32) {
    %c0_i32 = arith.constant 0 : i32
    %c0_i32_0 = arith.constant 0 : i32
    %c0_i32_1 = arith.constant 0 : i32
    return %c0_i32, %c0_i32_0 : i32, i32
  }
  func.func @transform_4(%arg0: i32) -> (i32, i32) {
    %c0_i32 = arith.constant 0 : i32
    %c0_i32_0 = arith.constant 0 : i32
    %c0_i32_1 = arith.constant 0 : i32
    return %c0_i32, %c0_i32_0 : i32, i32
  }
  func.func @transform_5(%arg0: i32) -> (i32, i32, i32) {
    %c0_i32 = arith.constant 0 : i32
    %c0_i32_0 = arith.constant 0 : i32
    %c0_i32_1 = arith.constant 0 : i32
    return %arg0, %c0_i32, %c0_i32_0 : i32, i32, i32
  }
}

</mosaic_0001>

<llo_original>
// kernel: query_attention_forward.1
$region0: #{query_attention_forward.1}
  #allocation0 [shape = 'u32[]', space=smem, size = 0x4, offset = 0x4, fixed_abs, tag = 'smem constant byte address 0x4 - core index']
  #allocation1 [shape = 'u32[144,128]{1,0:T(1,128)}', space=vmem, size = 0x12000, scoped, tag = 'internal scratch']
  %s0 = inlined_call_operand.vmem [shape: f32[2,8,32], index: 0, kind: input, shape index: {}]
  %s1 = inlined_call_operand.vmem [shape: f32[2,9,32], index: 1, kind: input, shape index: {}]
  %s2 = inlined_call_operand.vmem [shape: f32[32,64], index: 2, kind: input, shape index: {}]
  %s3 = inlined_call_operand.vmem [shape: f32[32,32], index: 3, kind: input, shape index: {}]
  %s4 = inlined_call_operand.vmem [shape: f32[1,32], index: 4, kind: input, shape index: {}]
  %s5 = inlined_call_operand.vmem [shape: f32[2,9,32], index: 5, kind: output, shape index: {}]
  %s6 = sld [smem:[#allocation0]]
  $region53: #{query_attention_forward.1} parent=0
    _
  %s8 = ssub.s32 1, %s6
  %s9 = scalar_select 0, %s8, %s6
  loop: start=0, step=1, limit=4
  $region2: #{query_attention_forward.1} parent=0 // loop_pre_header
    _
  $region3: #{query_attention_forward.1} parent=0 // loop_header
    %s11 = sphi 0, %s15
    %p12 = scmp.ge.s32.totalorder %s11, 4
    %s21 = sphi 0, %s23
    %s24 = sphi 0, %s21
    %s25 = sphi 0, %s24
    %s41 = sphi 0, %s25
    %s47 = sphi 0, %s49
    %s50 = sphi 0, %s47
    %s51 = sphi 0, %s50
    %s67 = sphi 0, %s51
    %s71 = sphi 0, %s71
    %s73 = sphi 0, %s71
    %s74 = sphi 0, %s73
    %s88 = sphi 0, %s74
    %s92 = sphi 0, %s92
    %s94 = sphi 0, %s92
    %s95 = sphi 0, %s94
    %s109 = sphi 0, %s95
    %s113 = sphi 0, %s113
    %s115 = sphi 0, %s113
    %s116 = sphi 0, %s115
    %s130 = sphi 0, %s116
    %s136 = sphi 0, %s138
    %s139 = sphi 0, %s136
    %s140 = sphi 0, %s139
    %s156 = sphi 0, %s140
  $region4: #{query_attention_forward.1} parent=0 // loop_header_branch
    %14 = sbr.rel (%p12) target = $region8
  $region5: #{query_attention_forward.1} parent=0 // loop_body
    %s16 = ssub.s32 %s11, 1
    %s17 = ssub.s32 %s11, 2
    %s18 = sadd.s32 %s11, 1
    %s19 = ssub.s32 %s11, %s18
    %p20 = scmp.eq.s32.totalorder %s19, 0
    %s22 = sadd.s32 %s21, 1
    %s23 = scalar_select %p20, %s21, %s22
    %p26 = pneg %p20
    %p27 = scmp.eq.s32.totalorder %s11, 1
    %p28 = por %p26, %p27
    %p29 = scmp.ne.s32.totalorder %s21, %s24
    %p30 = scmp.eq.s32.totalorder %s11, 0
    %p31 = por %p29, %p30
    %p32 = scmp.ne.s32.totalorder %s21, %s24
    %p33 = scmp.eq.s32.totalorder %s16, 1
    %p34 = por %p32, %p33
    %p35 = scmp.ne.s32.totalorder %s24, %s25
    %p36 = scmp.eq.s32.totalorder %s16, 0
    %p37 = por %p35, %p36
    %p38 = scmp.ne.s32.totalorder %s24, %s25
    %p39 = scmp.eq.s32.totalorder %s17, 1
    %p40 = por %p38, %p39
    %p42 = scmp.ne.s32.totalorder %s25, %s41
    %p43 = scmp.eq.s32.totalorder %s17, 0
    %p44 = por %p42, %p43
    %s45 = ssub.s32 %s11, %s18
    %p46 = scmp.eq.s32.totalorder %s45, 0
    %s48 = sadd.s32 %s47, 1
    %s49 = scalar_select %p46, %s47, %s48
    %p52 = pneg %p46
    %p53 = scmp.eq.s32.totalorder %s11, 1
    %p54 = por %p52, %p53
    %p55 = scmp.ne.s32.totalorder %s47, %s50
    %p56 = scmp.eq.s32.totalorder %s11, 0
    %p57 = por %p55, %p56
    %p58 = scmp.ne.s32.totalorder %s47, %s50
    %p59 = scmp.eq.s32.totalorder %s16, 1
    %p60 = por %p58, %p59
    %p61 = scmp.ne.s32.totalorder %s50, %s51
    %p62 = scmp.eq.s32.totalorder %s16, 0
    %p63 = por %p61, %p62
    %p64 = scmp.ne.s32.totalorder %s50, %s51
    %p65 = scmp.eq.s32.totalorder %s17, 1
    %p66 = por %p64, %p65
    %p68 = scmp.ne.s32.totalorder %s51, %s67
    %p69 = scmp.eq.s32.totalorder %s17, 0
    %p70 = por %p68, %p69
    %s72 = sadd.s32 %s71, 1
    %p75 = scmp.eq.s32.totalorder %s11, 1
    %p76 = scmp.ne.s32.totalorder %s71, %s73
    %p77 = scmp.eq.s32.totalorder %s11, 0
    %p78 = por %p76, %p77
    %p79 = scmp.ne.s32.totalorder %s71, %s73
    %p80 = scmp.eq.s32.totalorder %s16, 1
    %p81 = por %p79, %p80
    %p82 = scmp.ne.s32.totalorder %s73, %s74
    %p83 = scmp.eq.s32.totalorder %s16, 0
    %p84 = por %p82, %p83
    %p85 = scmp.ne.s32.totalorder %s73, %s74
    %p86 = scmp.eq.s32.totalorder %s17, 1
    %p87 = por %p85, %p86
    %p89 = scmp.ne.s32.totalorder %s74, %s88
    %p90 = scmp.eq.s32.totalorder %s17, 0
    %p91 = por %p89, %p90
    %s93 = sadd.s32 %s92, 1
    %p96 = scmp.eq.s32.totalorder %s11, 1
    %p97 = scmp.ne.s32.totalorder %s92, %s94
    %p98 = scmp.eq.s32.totalorder %s11, 0
    %p99 = por %p97, %p98
    %p100 = scmp.ne.s32.totalorder %s92, %s94
    %p101 = scmp.eq.s32.totalorder %s16, 1
    %p102 = por %p100, %p101
    %p103 = scmp.ne.s32.totalorder %s94, %s95
    %p104 = scmp.eq.s32.totalorder %s16, 0
    %p105 = por %p103, %p104
    %p106 = scmp.ne.s32.totalorder %s94, %s95
    %p107 = scmp.eq.s32.totalorder %s17, 1
    %p108 = por %p106, %p107
    %p110 = scmp.ne.s32.totalorder %s95, %s109
    %p111 = scmp.eq.s32.totalorder %s17, 0
    %p112 = por %p110, %p111
    %s114 = sadd.s32 %s113, 1
    %p117 = scmp.eq.s32.totalorder %s11, 1
    %p118 = scmp.ne.s32.totalorder %s113, %s115
    %p119 = scmp.eq.s32.totalorder %s11, 0
    %p120 = por %p118, %p119
    %p121 = scmp.ne.s32.totalorder %s113, %s115
    %p122 = scmp.eq.s32.totalorder %s16, 1
    %p123 = por %p121, %p122
    %p124 = scmp.ne.s32.totalorder %s115, %s116
    %p125 = scmp.eq.s32.totalorder %s16, 0
    %p126 = por %p124, %p125
    %p127 = scmp.ne.s32.totalorder %s115, %s116
    %p128 = scmp.eq.s32.totalorder %s17, 1
    %p129 = por %p127, %p128
    %p131 = scmp.ne.s32.totalorder %s116, %s130
    %p132 = scmp.eq.s32.totalorder %s17, 0
    %p133 = por %p131, %p132
    %s134 = ssub.s32 %s11, %s18
    %p135 = scmp.eq.s32.totalorder %s134, 0
    %s137 = sadd.s32 %s136, 1
    %s138 = scalar_select %p135, %s136, %s137
    %p141 = pneg %p135
    %p142 = scmp.eq.s32.totalorder %s11, 1
    %p143 = por %p141, %p142
    %p144 = scmp.ne.s32.totalorder %s136, %s139
    %p145 = scmp.eq.s32.totalorder %s11, 0
    %p146 = por %p144, %p145
    %p147 = scmp.ne.s32.totalorder %s136, %s139
    %p148 = scmp.eq.s32.totalorder %s16, 1
    %p149 = por %p147, %p148
    %p150 = scmp.ne.s32.totalorder %s139, %s140
    %p151 = scmp.eq.s32.totalorder %s16, 0
    %p152 = por %p150, %p151
    %p153 = scmp.ne.s32.totalorder %s139, %s140
    %p154 = scmp.eq.s32.totalorder %s17, 1
    %p155 = por %p153, %p154
    %p157 = scmp.ne.s32.totalorder %s140, %s156
    %p158 = scmp.eq.s32.totalorder %s17, 0
    %p159 = por %p157, %p158
    %p160 = scmp.le.s32.totalorder 1, %s11
    %p161 = scmp.lt.s32.totalorder %s11, 3
    %p162 = pnand %p160, %p161
    %p163 = pneg %p162
    // Predicated region
    $region9: #{query_attention_forward.1} parent=5 // pred_check
      _
    $region10: #{query_attention_forward.1} parent=5 // pred_check_branch
      %165 = sbr.rel (%p162) target = $region12
    $region11: #{query_attention_forward.1} parent=5 // pred_region
      %s166 = ssub.s32 %s11, 1
      // Predicated region
      $region13: #{query_attention_forward.1} parent=11 // pred_check
        %p167 = pneg %p84
      $region14: #{query_attention_forward.1} parent=11 // pred_check_branch
        %169 = sbr.rel (%p167) target = $region16
      $region15: #{query_attention_forward.1} parent=11 // pred_region
        _
      $region16: #{query_attention_forward.1} parent=11 // pred_fallthru
        _
      // Predicated region
      $region17: #{query_attention_forward.1} parent=11 // pred_check
        %p170 = pneg %p105
      $region18: #{query_attention_forward.1} parent=11 // pred_check_branch
        %172 = sbr.rel (%p170) target = $region20
      $region19: #{query_attention_forward.1} parent=11 // pred_region
        _
      $region20: #{query_attention_forward.1} parent=11 // pred_fallthru
        _
      // Predicated region
      $region21: #{query_attention_forward.1} parent=11 // pred_check
        %p173 = pneg %p126
      $region22: #{query_attention_forward.1} parent=11 // pred_check_branch
        %175 = sbr.rel (%p173) target = $region24
      $region23: #{query_attention_forward.1} parent=11 // pred_region
        _
      $region24: #{query_attention_forward.1} parent=11 // pred_fallthru
        _
    $region12: #{query_attention_forward.1} parent=5 // pred_fallthru
      _
    %p176 = scmp.lt.s32.totalorder %s11, 2
    // Predicated region
    $region25: #{query_attention_forward.1} parent=5 // pred_check
      %p177 = pneg %p176
    $region26: #{query_attention_forward.1} parent=5 // pred_check_branch
      %179 = sbr.rel (%p177) target = $region28
    $region27: #{query_attention_forward.1} parent=5 // pred_region
      // Predicated region
      $region29: #{query_attention_forward.1} parent=27 // pred_check
        %p180 = pneg %p31
      $region30: #{query_attention_forward.1} parent=27 // pred_check_branch
        %182 = sbr.rel (%p180) target = $region32
      $region31: #{query_attention_forward.1} parent=27 // pred_region
        %p183 = scmp.lt.s32.totalorder %s11, 1
        %s184 = scalar_select %p183, %s11, 1
        %s185 = smul.addr %s184, 8
        %s186 = scalar_lea.vmem %s0, %s185
      $region32: #{query_attention_forward.1} parent=27 // pred_fallthru
        _
      // Predicated region
      $region33: #{query_attention_forward.1} parent=27 // pred_check
        %p187 = pneg %p57
      $region34: #{query_attention_forward.1} parent=27 // pred_check_branch
        %189 = sbr.rel (%p187) target = $region36
      $region35: #{query_attention_forward.1} parent=27 // pred_region
        %p190 = scmp.lt.s32.totalorder %s11, 1
        %s191 = scalar_select %p190, %s11, 1
        %s192 = smul.addr %s191, 2
        %s193 = smul.addr %s192, 8
        %s194 = scalar_lea.vmem %s1, %s193
      $region36: #{query_attention_forward.1} parent=27 // pred_fallthru
        _
    $region28: #{query_attention_forward.1} parent=5 // pred_fallthru
      _
    %p195 = scmp.le.s32.totalorder 1, %s11
    %p196 = scmp.lt.s32.totalorder %s11, 3
    %p197 = pnand %p195, %p196
    %p198 = pneg %p197
    // Predicated region
    $region37: #{query_attention_forward.1} parent=5 // pred_check
      _
    $region38: #{query_attention_forward.1} parent=5 // pred_check_branch
      %200 = sbr.rel (%p197) target = $region40
    $region39: #{query_attention_forward.1} parent=5 // pred_region
      %s201 = ssub.s32 %s11, 1
      %p202 = scmp.lt.s32.totalorder %s16, 1
      %s203 = scalar_select %p202, %s16, 1
      %s204 = smul.addr %s203, 8
      %s205 = scalar_lea.vmem %s0, %s204
      %p206 = pneg %p37
      %p207 = pneg %p34
      %p208 = scmp.lt.s32.totalorder %s16, 1
      %s209 = scalar_select %p208, %s16, 1
      %s210 = smul.addr %s209, 2
      %s211 = smul.addr %s210, 8
      %s212 = scalar_lea.vmem %s1, %s211
      %p213 = pneg %p63
      %p214 = pneg %p60
      %p215 = pneg %p84
      %p216 = pneg %p81
      %p217 = pneg %p105
      %p218 = pneg %p102
      %p219 = pneg %p126
      %p220 = pneg %p123
      %p221 = pneg %p152
      %p222 = pneg %p149
      %p223 = scmp.lt.s32.totalorder %s16, 1
      %s224 = scalar_select %p223, %s16, 1
      %s225 = smul.addr %s224, 2
      %s226 = smul.addr %s225, 8
      %s227 = scalar_lea.vmem %s5, %s226
      %p228 = scmp.lt.s32.totalorder %s16, 1
      %s229 = scalar_select %p228, %s16, 1
      %s230 = smul.addr %s229, 8
      %s231 = scalar_lea.vmem %s0, %s230
      %p232 = scmp.lt.s32.totalorder %s16, 1
      %s233 = scalar_select %p232, %s16, 1
      %s234 = smul.addr %s233, 2
      %s235 = smul.addr %s234, 8
      %s236 = scalar_lea.vmem %s1, %s235
      %p237 = scmp.lt.s32.totalorder %s16, 1
      %s238 = scalar_select %p237, %s16, 1
      %s239 = smul.addr %s238, 2
      %s240 = smul.addr %s239, 8
      %s241 = scalar_lea.vmem %s5, %s240
      %v242 = vld [vmem:[%s231] sm:$0xff]
      %v243 = vld [vmem:[%s236] sm:$0xff]
      %v244 = vld [vmem:[%s236 + $0x8] sm:$0x1]
      %v245 = vld [vmem:[%s2] sm:$0xff]
      %v246 = vld [vmem:[%s2 + $0x8] sm:$0xff]
      %v247 = vld [vmem:[%s2 + $0x10] sm:$0xff]
      %v248 = vld [vmem:[%s2 + $0x18] sm:$0xff]
      %vm249 = vcmask 261120
      %v251 = vsel %vm249, %v242, 0
      %253 = vmatprep.subr.mxu0 0.0
      %254 = vmatpush1.msra.mxu0 %v245
      %255 = vmatprep.subr.mxu0 0.0
      %256 = vmatpush1.msra.mxu0 %v246
      %257 = vmatprep.subr.mxu0 0.0
      %258 = vmatpush1.msra.mxu0 %v247
      %259 = vmatprep.subr.mxu0 0.0
      %260 = vmatpush1.msra.mxu0 %v248
      %261 = vmatprep.subr.mxu0 0.0
      %262 = vmatpush1.msra.mxu0 0.0
      %263 = vmatprep.subr.mxu0 0.0
      %264 = vmatpush1.msra.mxu0 0.0
      %265 = vmatprep.subr.mxu0 0.0
      %266 = vmatpush1.msra.mxu0 0.0
      %267 = vmatprep.subr.mxu0 0.0
      %268 = vmatpush1.msra.mxu0 0.0
      %269 = vmatprep.subr.mxu0 0.0
      %270 = vmatpush1.msra.mxu0 0.0
      %271 = vmatprep.subr.mxu0 0.0
      %272 = vmatpush1.msra.mxu0 0.0
      %273 = vmatprep.subr.mxu0 0.0
      %274 = vmatpush1.msra.mxu0 0.0
      %275 = vmatprep.subr.mxu0 0.0
      %276 = vmatpush1.msra.mxu0 0.0
      %277 = vmatprep.subr.mxu0 0.0
      %278 = vmatpush1.msra.mxu0 0.0
      %279 = vmatprep.subr.mxu0 0.0
      %280 = vmatpush1.msra.mxu0 0.0
      %281 = vmatprep.subr.mxu0 0.0
      %282 = vmatpush1.msra.mxu0 0.0
      %283 = vmatprep.subr.mxu0 0.0
      %284 = vmatpush1.msra.mxu0 0.0
      %285 = vmatprep.subr.mxu0 0.0
      %286 = vmatpush1.msra.mxu0 0.0
      %287 = vmatprep.subr.mxu0 0.0
      %288 = vmatpush1.msra.mxu0 0.0
      %289 = vmatprep.subr.mxu0 0.0
      %290 = vmatpush1.msra.mxu0 0.0
      %291 = vmatprep.subr.mxu0 0.0
      %292 = vmatpush1.msra.mxu0 0.0
      %293 = vmatprep.subr.mxu0 0.0
      %294 = vmatpush1.msra.mxu0 0.0
      %295 = vmatprep.subr.mxu0 0.0
      %296 = vmatpush1.msra.mxu0 0.0
      %297 = vmatprep.subr.mxu0 0.0
      %298 = vmatpush1.msra.mxu0 0.0
      %299 = vmatprep.subr.mxu0 0.0
      %300 = vmatpush1.msra.mxu0 0.0
      %301 = vmatprep.subr.mxu0 0.0
      %302 = vmatpush1.msra.mxu0 0.0
      %303 = vmatprep.subr.mxu0 0.0
      %304 = vmatpush1.msra.mxu0 0.0
      %305 = vmatprep.subr.mxu0 0.0
      %306 = vmatpush1.msra.mxu0 0.0
      %307 = vmatprep.subr.mxu0 0.0
      %308 = vmatpush1.msra.mxu0 0.0
      %309 = vmatprep.subr.mxu0 0.0
      %310 = vmatpush1.msra.mxu0 0.0
      %311 = vmatprep.subr.mxu0 0.0
      %312 = vmatpush1.msra.mxu0 0.0
      %313 = vmatprep.subr.mxu0 0.0
      %314 = vmatpush1.msra.mxu0 0.0
      %315 = vmatprep.subr.mxu0 0.0
      %316 = vmatpush1.msra.mxu0 0.0
      %317 = vmatprep.mubr.f32.mxu0 0.0
      %318 = vmatmul.mubr.f32.gmra.mrb[0].mxu0 %v251
      %v319 = vpop.f32.mrb[0].mxu0
      %v320 = vadd.f32 0.0, %v319
      %v321 = vpop.f32.mrb[0].mxu0
      %322 = vdwg.mxu0
      %vm323 = vcmask 130048
      %v325 = vsel %vm323, %v243, 0
      %v328 = vsel %vm323, %v244, 0
      %v331 = vsel %vm323, %v320, 0
      %333 = vmatprep.subr.mxu0 0.0
      %334 = vmatpush1.xpose.msra.mxu0 %v331
      %335 = vmatprep.subr.mxu0 0.0
      %336 = vmatpush1.xpose.msra.mxu0 0.0
      %337 = vmatprep.subr.mxu0 0.0
      %338 = vmatpush1.xpose.msra.mxu0 0.0
      %339 = vmatprep.subr.mxu0 0.0
      %340 = vmatpush1.xpose.msra.mxu0 0.0
      %341 = vmatprep.subr.mxu0 0.0
      %342 = vmatpush1.xpose.msra.mxu0 0.0
      %343 = vmatprep.subr.mxu0 0.0
      %344 = vmatpush1.xpose.msra.mxu0 0.0
      %345 = vmatprep.subr.mxu0 0.0
      %346 = vmatpush1.xpose.msra.mxu0 0.0
      %347 = vmatprep.subr.mxu0 0.0
      %348 = vmatpush1.xpose.msra.mxu0 0.0
      %349 = vmatprep.subr.mxu0 0.0
      %350 = vmatpush1.xpose.msra.mxu0 0.0
      %351 = vmatprep.subr.mxu0 0.0
      %352 = vmatpush1.xpose.msra.mxu0 0.0
      %353 = vmatprep.subr.mxu0 0.0
      %354 = vmatpush1.xpose.msra.mxu0 0.0
      %355 = vmatprep.subr.mxu0 0.0
      %356 = vmatpush1.xpose.msra.mxu0 0.0
      %357 = vmatprep.subr.mxu0 0.0
      %358 = vmatpush1.xpose.msra.mxu0 0.0
      %359 = vmatprep.subr.mxu0 0.0
      %360 = vmatpush1.xpose.msra.mxu0 0.0
      %361 = vmatprep.subr.mxu0 0.0
      %362 = vmatpush1.xpose.msra.mxu0 0.0
      %363 = vmatprep.subr.mxu0 0.0
      %364 = vmatpush1.xpose.msra.mxu0 0.0
      %365 = vmatprep.subr.mxu0 0.0
      %366 = vmatpush1.xpose.msra.mxu0 0.0
      %367 = vmatprep.subr.mxu0 0.0
      %368 = vmatpush1.xpose.msra.mxu0 0.0
      %369 = vmatprep.subr.mxu0 0.0
      %370 = vmatpush1.xpose.msra.mxu0 0.0
      %371 = vmatprep.subr.mxu0 0.0
      %372 = vmatpush1.xpose.msra.mxu0 0.0
      %373 = vmatprep.subr.mxu0 0.0
      %374 = vmatpush1.xpose.msra.mxu0 0.0
      %375 = vmatprep.subr.mxu0 0.0
      %376 = vmatpush1.xpose.msra.mxu0 0.0
      %377 = vmatprep.subr.mxu0 0.0
      %378 = vmatpush1.xpose.msra.mxu0 0.0
      %379 = vmatprep.subr.mxu0 0.0
      %380 = vmatpush1.xpose.msra.mxu0 0.0
      %381 = vmatprep.subr.mxu0 0.0
      %382 = vmatpush1.xpose.msra.mxu0 0.0
      %383 = vmatprep.subr.mxu0 0.0
      %384 = vmatpush1.xpose.msra.mxu0 0.0
      %385 = vmatprep.subr.mxu0 0.0
      %386 = vmatpush1.xpose.msra.mxu0 0.0
      %387 = vmatprep.subr.mxu0 0.0
      %388 = vmatpush1.xpose.msra.mxu0 0.0
      %389 = vmatprep.subr.mxu0 0.0
      %390 = vmatpush1.xpose.msra.mxu0 0.0
      %391 = vmatprep.subr.mxu0 0.0
      %392 = vmatpush1.xpose.msra.mxu0 0.0
      %393 = vmatprep.subr.mxu0 0.0
      %394 = vmatpush1.xpose.msra.mxu0 0.0
      %395 = vmatprep.subr.mxu0 0.0
      %396 = vmatpush1.xpose.msra.mxu0 0.0
      %397 = vmatprep.mubr.f32.mxu0 0.0
      %398 = vmatmul.mubr.f32.gmra.mrb[0].mxu0 %v325
      %v399 = vpop.f32.mrb[0].mxu0
      %v400 = vadd.f32 0.0, %v399
      %v401 = vpop.f32.mrb[0].mxu0
      %402 = vmatprep.mubr.f32.mxu0 0.0
      %403 = vmatmul.mubr.f32.gmra.mrb[0].mxu0 %v328
      %v404 = vpop.f32.mrb[0].mxu0
      %v405 = vadd.f32 0.0, %v404
      %v406 = vpop.f32.mrb[0].mxu0
      %407 = vdwg.mxu0
      %v408 = vmul.f32 %v400, 0.25
      %v409 = vmul.f32 %v405, 0.25
      %vm410 = vcmask 64512
      %v411 = vsel %vm410, %v408, -inf
      %412 = vmax.xlane.f32.xlu0 %v411
      %v413 = vpop.xlane.xlu0 %412
      %vm414 = vcmask 57344
      %v415 = vsel %vm414, %v409, -inf
      %416 = vmax.xlane.f32.xlu0 %v415
      %v417 = vpop.xlane.xlu0 %416
      %v418 = vsub.f32 %v408, %v413
      %v419 = vsub.f32 %v409, %v417
      %v420 = vmul.f32 %v418, 1.442695
      %v421 = vpow.pop %v420
      %v422 = vmul.f32 %v419, 1.442695
      %v423 = vpow.pop %v422
      %v424 = vsel %vm410, %v421, 0.0
      %425 = vadd.xlane.f32.xlu0 %v424
      %v426 = vpop.xlane.xlu0 %425
      %v427 = vsel %vm414, %v423, 0.0
      %428 = vadd.xlane.f32.xlu0 %v427
      %v429 = vpop.xlane.xlu0 %428
      %v430 = vrcp.pop %v426
      %v431 = vmul.f32 %v421, %v430
      %v432 = vrcp.pop %v429
      %v433 = vmul.f32 %v423, %v432
      %434 = vrot.lane.b32.xlu0 %v320, 96
      %v435 = vpop.permute.xlu0 %434
      %v438 = vsel %vm410, %v431, 0
      %v441 = vsel %vm410, %v433, 0
      %443 = vmatprep.subr.mxu0 0.0
      %444 = vmatpush1.msra.mxu0 %v435
      %445 = vmatprep.subr.mxu0 0.0
      %446 = vmatpush1.msra.mxu0 0.0
      %447 = vmatprep.subr.mxu0 0.0
      %448 = vmatpush1.msra.mxu0 0.0
      %449 = vmatprep.subr.mxu0 0.0
      %450 = vmatpush1.msra.mxu0 0.0
      %451 = vmatprep.subr.mxu0 0.0
      %452 = vmatpush1.msra.mxu0 0.0
      %453 = vmatprep.subr.mxu0 0.0
      %454 = vmatpush1.msra.mxu0 0.0
      %455 = vmatprep.subr.mxu0 0.0
      %456 = vmatpush1.msra.mxu0 0.0
      %457 = vmatprep.subr.mxu0 0.0
      %458 = vmatpush1.msra.mxu0 0.0
      %459 = vmatprep.subr.mxu0 0.0
      %460 = vmatpush1.msra.mxu0 0.0
      %461 = vmatprep.subr.mxu0 0.0
      %462 = vmatpush1.msra.mxu0 0.0
      %463 = vmatprep.subr.mxu0 0.0
      %464 = vmatpush1.msra.mxu0 0.0
      %465 = vmatprep.subr.mxu0 0.0
      %466 = vmatpush1.msra.mxu0 0.0
      %467 = vmatprep.subr.mxu0 0.0
      %468 = vmatpush1.msra.mxu0 0.0
      %469 = vmatprep.subr.mxu0 0.0
      %470 = vmatpush1.msra.mxu0 0.0
      %471 = vmatprep.subr.mxu0 0.0
      %472 = vmatpush1.msra.mxu0 0.0
      %473 = vmatprep.subr.mxu0 0.0
      %474 = vmatpush1.msra.mxu0 0.0
      %475 = vmatprep.subr.mxu0 0.0
      %476 = vmatpush1.msra.mxu0 0.0
      %477 = vmatprep.subr.mxu0 0.0
      %478 = vmatpush1.msra.mxu0 0.0
      %479 = vmatprep.subr.mxu0 0.0
      %480 = vmatpush1.msra.mxu0 0.0
      %481 = vmatprep.subr.mxu0 0.0
      %482 = vmatpush1.msra.mxu0 0.0
      %483 = vmatprep.subr.mxu0 0.0
      %484 = vmatpush1.msra.mxu0 0.0
      %485 = vmatprep.subr.mxu0 0.0
      %486 = vmatpush1.msra.mxu0 0.0
      %487 = vmatprep.subr.mxu0 0.0
      %488 = vmatpush1.msra.mxu0 0.0
      %489 = vmatprep.subr.mxu0 0.0
      %490 = vmatpush1.msra.mxu0 0.0
      %491 = vmatprep.subr.mxu0 0.0
      %492 = vmatpush1.msra.mxu0 0.0
      %493 = vmatprep.subr.mxu0 0.0
      %494 = vmatpush1.msra.mxu0 0.0
      %495 = vmatprep.subr.mxu0 0.0
      %496 = vmatpush1.msra.mxu0 0.0
      %497 = vmatprep.subr.mxu0 0.0
      %498 = vmatpush1.msra.mxu0 0.0
      %499 = vmatprep.subr.mxu0 0.0
      %500 = vmatpush1.msra.mxu0 0.0
      %501 = vmatprep.subr.mxu0 0.0
      %502 = vmatpush1.msra.mxu0 0.0
      %503 = vmatprep.subr.mxu0 0.0
      %504 = vmatpush1.msra.mxu0 0.0
      %505 = vmatprep.subr.mxu0 0.0
      %506 = vmatpush1.msra.mxu0 0.0
      %507 = vmatprep.mubr.f32.mxu0 0.0
      %508 = vmatmul.mubr.f32.gmra.mrb[0].mxu0 %v438
      %v509 = vpop.f32.mrb[0].mxu0
      %v510 = vadd.f32 0.0, %v509
      %v511 = vpop.f32.mrb[0].mxu0
      %512 = vmatprep.mubr.f32.mxu0 0.0
      %513 = vmatmul.mubr.f32.gmra.mrb[0].mxu0 %v441
      %v514 = vpop.f32.mrb[0].mxu0
      %v515 = vadd.f32 0.0, %v514
      %v516 = vpop.f32.mrb[0].mxu0
      %517 = vdwg.mxu0
      %518 = vrot.lane.b32.xlu0 %v243, 112
      %v519 = vpop.permute.xlu0 %518
      %520 = vrot.lane.b32.xlu0 %v244, 112
      %v521 = vpop.permute.xlu0 %520
      %522 = vrot.lane.b32.xlu0 %v320, 112
      %v523 = vpop.permute.xlu0 %522
      %v524 = vsel %vm323, %v519, 0
      %v526 = vsel %vm323, %v521, 0
      %v528 = vsel %vm323, %v523, 0
      %530 = vmatprep.subr.mxu0 0.0
      %531 = vmatpush1.xpose.msra.mxu0 %v528
      %532 = vmatprep.subr.mxu0 0.0
      %533 = vmatpush1.xpose.msra.mxu0 0.0
      %534 = vmatprep.subr.mxu0 0.0
      %535 = vmatpush1.xpose.msra.mxu0 0.0
      %536 = vmatprep.subr.mxu0 0.0
      %537 = vmatpush1.xpose.msra.mxu0 0.0
      %538 = vmatprep.subr.mxu0 0.0
      %539 = vmatpush1.xpose.msra.mxu0 0.0
      %540 = vmatprep.subr.mxu0 0.0
      %541 = vmatpush1.xpose.msra.mxu0 0.0
      %542 = vmatprep.subr.mxu0 0.0
      %543 = vmatpush1.xpose.msra.mxu0 0.0
      %544 = vmatprep.subr.mxu0 0.0
      %545 = vmatpush1.xpose.msra.mxu0 0.0
      %546 = vmatprep.subr.mxu0 0.0
      %547 = vmatpush1.xpose.msra.mxu0 0.0
      %548 = vmatprep.subr.mxu0 0.0
      %549 = vmatpush1.xpose.msra.mxu0 0.0
      %550 = vmatprep.subr.mxu0 0.0
      %551 = vmatpush1.xpose.msra.mxu0 0.0
      %552 = vmatprep.subr.mxu0 0.0
      %553 = vmatpush1.xpose.msra.mxu0 0.0
      %554 = vmatprep.subr.mxu0 0.0
      %555 = vmatpush1.xpose.msra.mxu0 0.0
      %556 = vmatprep.subr.mxu0 0.0
      %557 = vmatpush1.xpose.msra.mxu0 0.0
      %558 = vmatprep.subr.mxu0 0.0
      %559 = vmatpush1.xpose.msra.mxu0 0.0
      %560 = vmatprep.subr.mxu0 0.0
      %561 = vmatpush1.xpose.msra.mxu0 0.0
      %562 = vmatprep.subr.mxu0 0.0
      %563 = vmatpush1.xpose.msra.mxu0 0.0
      %564 = vmatprep.subr.mxu0 0.0
      %565 = vmatpush1.xpose.msra.mxu0 0.0
      %566 = vmatprep.subr.mxu0 0.0
      %567 = vmatpush1.xpose.msra.mxu0 0.0
      %568 = vmatprep.subr.mxu0 0.0
      %569 = vmatpush1.xpose.msra.mxu0 0.0
      %570 = vmatprep.subr.mxu0 0.0
      %571 = vmatpush1.xpose.msra.mxu0 0.0
      %572 = vmatprep.subr.mxu0 0.0
      %573 = vmatpush1.xpose.msra.mxu0 0.0
      %574 = vmatprep.subr.mxu0 0.0
      %575 = vmatpush1.xpose.msra.mxu0 0.0
      %576 = vmatprep.subr.mxu0 0.0
      %577 = vmatpush1.xpose.msra.mxu0 0.0
      %578 = vmatprep.subr.mxu0 0.0
      %579 = vmatpush1.xpose.msra.mxu0 0.0
      %580 = vmatprep.subr.mxu0 0.0
      %581 = vmatpush1.xpose.msra.mxu0 0.0
      %582 = vmatprep.subr.mxu0 0.0
      %583 = vmatpush1.xpose.msra.mxu0 0.0
      %584 = vmatprep.subr.mxu0 0.0
      %585 = vmatpush1.xpose.msra.mxu0 0.0
      %586 = vmatprep.subr.mxu0 0.0
      %587 = vmatpush1.xpose.msra.mxu0 0.0
      %588 = vmatprep.subr.mxu0 0.0
      %589 = vmatpush1.xpose.msra.mxu0 0.0
      %590 = vmatprep.subr.mxu0 0.0
      %591 = vmatpush1.xpose.msra.mxu0 0.0
      %592 = vmatprep.subr.mxu0 0.0
      %593 = vmatpush1.xpose.msra.mxu0 0.0
      %594 = vmatprep.mubr.f32.mxu0 0.0
      %595 = vmatmul.mubr.f32.gmra.mrb[0].mxu0 %v524
      %v596 = vpop.f32.mrb[0].mxu0
      %v597 = vadd.f32 0.0, %v596
      %v598 = vpop.f32.mrb[0].mxu0
      %599 = vmatprep.mubr.f32.mxu0 0.0
      %600 = vmatmul.mubr.f32.gmra.mrb[0].mxu0 %v526
      %v601 = vpop.f32.mrb[0].mxu0
      %v602 = vadd.f32 0.0, %v601
      %v603 = vpop.f32.mrb[0].mxu0
      %604 = vdwg.mxu0
      %v605 = vmul.f32 %v597, 0.25
      %v606 = vmul.f32 %v602, 0.25
      %v607 = vsel %vm410, %v605, -inf
      %608 = vmax.xlane.f32.xlu0 %v607
      %v609 = vpop.xlane.xlu0 %608
      %v610 = vsel %vm414, %v606, -inf
      %611 = vmax.xlane.f32.xlu0 %v610
      %v612 = vpop.xlane.xlu0 %611
      %v613 = vsub.f32 %v605, %v609
      %v614 = vsub.f32 %v606, %v612
      %v615 = vmul.f32 %v613, 1.442695
      %v616 = vpow.pop %v615
      %v617 = vmul.f32 %v614, 1.442695
      %v618 = vpow.pop %v617
      %v619 = vsel %vm410, %v616, 0.0
      %620 = vadd.xlane.f32.xlu0 %v619
      %v621 = vpop.xlane.xlu0 %620
      %v622 = vsel %vm414, %v618, 0.0
      %623 = vadd.xlane.f32.xlu0 %v622
      %v624 = vpop.xlane.xlu0 %623
      %v625 = vrcp.pop %v621
      %v626 = vmul.f32 %v616, %v625
      %v627 = vrcp.pop %v624
      %v628 = vmul.f32 %v618, %v627
      %629 = vrot.lane.b32.xlu0 %v320, 80
      %v630 = vpop.permute.xlu0 %629
      %v633 = vsel %vm410, %v626, 0
      %v636 = vsel %vm410, %v628, 0
      %638 = vmatprep.subr.mxu0 0.0
      %639 = vmatpush1.msra.mxu0 %v630
      %640 = vmatprep.subr.mxu0 0.0
      %641 = vmatpush1.msra.mxu0 0.0
      %642 = vmatprep.subr.mxu0 0.0
      %643 = vmatpush1.msra.mxu0 0.0
      %644 = vmatprep.subr.mxu0 0.0
      %645 = vmatpush1.msra.mxu0 0.0
      %646 = vmatprep.subr.mxu0 0.0
      %647 = vmatpush1.msra.mxu0 0.0
      %648 = vmatprep.subr.mxu0 0.0
      %649 = vmatpush1.msra.mxu0 0.0
      %650 = vmatprep.subr.mxu0 0.0
      %651 = vmatpush1.msra.mxu0 0.0
      %652 = vmatprep.subr.mxu0 0.0
      %653 = vmatpush1.msra.mxu0 0.0
      %654 = vmatprep.subr.mxu0 0.0
      %655 = vmatpush1.msra.mxu0 0.0
      %656 = vmatprep.subr.mxu0 0.0
      %657 = vmatpush1.msra.mxu0 0.0
      %658 = vmatprep.subr.mxu0 0.0
      %659 = vmatpush1.msra.mxu0 0.0
      %660 = vmatprep.subr.mxu0 0.0
      %661 = vmatpush1.msra.mxu0 0.0
      %662 = vmatprep.subr.mxu0 0.0
      %663 = vmatpush1.msra.mxu0 0.0
      %664 = vmatprep.subr.mxu0 0.0
      %665 = vmatpush1.msra.mxu0 0.0
      %666 = vmatprep.subr.mxu0 0.0
      %667 = vmatpush1.msra.mxu0 0.0
      %668 = vmatprep.subr.mxu0 0.0
      %669 = vmatpush1.msra.mxu0 0.0
      %670 = vmatprep.subr.mxu0 0.0
      %671 = vmatpush1.msra.mxu0 0.0
      %672 = vmatprep.subr.mxu0 0.0
      %673 = vmatpush1.msra.mxu0 0.0
      %674 = vmatprep.subr.mxu0 0.0
      %675 = vmatpush1.msra.mxu0 0.0
      %676 = vmatprep.subr.mxu0 0.0
      %677 = vmatpush1.msra.mxu0 0.0
      %678 = vmatprep.subr.mxu0 0.0
      %679 = vmatpush1.msra.mxu0 0.0
      %680 = vmatprep.subr.mxu0 0.0
      %681 = vmatpush1.msra.mxu0 0.0
      %682 = vmatprep.subr.mxu0 0.0
      %683 = vmatpush1.msra.mxu0 0.0
      %684 = vmatprep.subr.mxu0 0.0
      %685 = vmatpush1.msra.mxu0 0.0
      %686 = vmatprep.subr.mxu0 0.0
      %687 = vmatpush1.msra.mxu0 0.0
      %688 = vmatprep.subr.mxu0 0.0
      %689 = vmatpush1.msra.mxu0 0.0
      %690 = vmatprep.subr.mxu0 0.0
      %691 = vmatpush1.msra.mxu0 0.0
      %692 = vmatprep.subr.mxu0 0.0
      %693 = vmatpush1.msra.mxu0 0.0
      %694 = vmatprep.subr.mxu0 0.0
      %695 = vmatpush1.msra.mxu0 0.0
      %696 = vmatprep.subr.mxu0 0.0
      %697 = vmatpush1.msra.mxu0 0.0
      %698 = vmatprep.subr.mxu0 0.0
      %699 = vmatpush1.msra.mxu0 0.0
      %700 = vmatprep.subr.mxu0 0.0
      %701 = vmatpush1.msra.mxu0 0.0
      %702 = vmatprep.mubr.f32.mxu0 0.0
      %703 = vmatmul.mubr.f32.gmra.mrb[0].mxu0 %v633
      %v704 = vpop.f32.mrb[0].mxu0
      %v705 = vadd.f32 0.0, %v704
      %v706 = vpop.f32.mrb[0].mxu0
      %707 = vmatprep.mubr.f32.mxu0 0.0
      %708 = vmatmul.mubr.f32.gmra.mrb[0].mxu0 %v636
      %v709 = vpop.f32.mrb[0].mxu0
      %v710 = vadd.f32 0.0, %v709
      %v711 = vpop.f32.mrb[0].mxu0
      %712 = vdwg.mxu0
      %715 = vrot.lane.b32.xlu0 %v705, 16
      %v716 = vpop.permute.xlu0 %715
      %717 = vrot.lane.b32.xlu0 %v710, 16
      %v718 = vpop.permute.xlu0 %717
      %v721 = vsel %vm323, %v510, %v716
      %v722 = vsel %vm323, %v515, %v718
      %v723 = vld [vmem:[%s3] sm:$0xff]
      %v724 = vld [vmem:[%s3 + $0x8] sm:$0xff]
      %v725 = vld [vmem:[%s3 + $0x10] sm:$0xff]
      %v726 = vld [vmem:[%s3 + $0x18] sm:$0xff]
      %v727 = vld [vmem:[%s4] sm:$0x1]
      %v729 = vlaneseq
      %v730 = vshrl.u32 %v729, 7
      %v731 = vsub.s32 0, %v730
      %v732 = vrot.slane %v727, %v731
      %v735 = vsel %vm249, %v721, 0
      %v738 = vsel %vm249, %v722, 0
      %740 = vmatprep.subr.mxu0 0.0
      %741 = vmatpush1.msra.mxu0 %v723
      %742 = vmatprep.subr.mxu0 0.0
      %743 = vmatpush1.msra.mxu0 %v724
      %744 = vmatprep.subr.mxu0 0.0
      %745 = vmatpush1.msra.mxu0 %v725
      %746 = vmatprep.subr.mxu0 0.0
      %747 = vmatpush1.msra.mxu0 %v726
      %748 = vmatprep.subr.mxu0 0.0
      %749 = vmatpush1.msra.mxu0 0.0
      %750 = vmatprep.subr.mxu0 0.0
      %751 = vmatpush1.msra.mxu0 0.0
      %752 = vmatprep.subr.mxu0 0.0
      %753 = vmatpush1.msra.mxu0 0.0
      %754 = vmatprep.subr.mxu0 0.0
      %755 = vmatpush1.msra.mxu0 0.0
      %756 = vmatprep.subr.mxu0 0.0
      %757 = vmatpush1.msra.mxu0 0.0
      %758 = vmatprep.subr.mxu0 0.0
      %759 = vmatpush1.msra.mxu0 0.0
      %760 = vmatprep.subr.mxu0 0.0
      %761 = vmatpush1.msra.mxu0 0.0
      %762 = vmatprep.subr.mxu0 0.0
      %763 = vmatpush1.msra.mxu0 0.0
      %764 = vmatprep.subr.mxu0 0.0
      %765 = vmatpush1.msra.mxu0 0.0
      %766 = vmatprep.subr.mxu0 0.0
      %767 = vmatpush1.msra.mxu0 0.0
      %768 = vmatprep.subr.mxu0 0.0
      %769 = vmatpush1.msra.mxu0 0.0
      %770 = vmatprep.subr.mxu0 0.0
      %771 = vmatpush1.msra.mxu0 0.0
      %772 = vmatprep.subr.mxu0 0.0
      %773 = vmatpush1.msra.mxu0 0.0
      %774 = vmatprep.subr.mxu0 0.0
      %775 = vmatpush1.msra.mxu0 0.0
      %776 = vmatprep.subr.mxu0 0.0
      %777 = vmatpush1.msra.mxu0 0.0
      %778 = vmatprep.subr.mxu0 0.0
      %779 = vmatpush1.msra.mxu0 0.0
      %780 = vmatprep.subr.mxu0 0.0
      %781 = vmatpush1.msra.mxu0 0.0
      %782 = vmatprep.subr.mxu0 0.0
      %783 = vmatpush1.msra.mxu0 0.0
      %784 = vmatprep.subr.mxu0 0.0
      %785 = vmatpush1.msra.mxu0 0.0
      %786 = vmatprep.subr.mxu0 0.0
      %787 = vmatpush1.msra.mxu0 0.0
      %788 = vmatprep.subr.mxu0 0.0
      %789 = vmatpush1.msra.mxu0 0.0
      %790 = vmatprep.subr.mxu0 0.0
      %791 = vmatpush1.msra.mxu0 0.0
      %792 = vmatprep.subr.mxu0 0.0
      %793 = vmatpush1.msra.mxu0 0.0
      %794 = vmatprep.subr.mxu0 0.0
      %795 = vmatpush1.msra.mxu0 0.0
      %796 = vmatprep.subr.mxu0 0.0
      %797 = vmatpush1.msra.mxu0 0.0
      %798 = vmatprep.subr.mxu0 0.0
      %799 = vmatpush1.msra.mxu0 0.0
      %800 = vmatprep.subr.mxu0 0.0
      %801 = vmatpush1.msra.mxu0 0.0
      %802 = vmatprep.subr.mxu0 0.0
      %803 = vmatpush1.msra.mxu0 0.0
      %804 = vmatprep.mubr.f32.mxu0 0.0
      %805 = vmatmul.mubr.f32.gmra.mrb[0].mxu0 %v735
      %v806 = vpop.f32.mrb[0].mxu0
      %v807 = vadd.f32 %v732, %v806
      %v808 = vpop.f32.mrb[0].mxu0
      %809 = vmatprep.mubr.f32.mxu0 0.0
      %810 = vmatmul.mubr.f32.gmra.mrb[0].mxu0 %v738
      %v811 = vpop.f32.mrb[0].mxu0
      %v812 = vadd.f32 %v732, %v811
      %v813 = vpop.f32.mrb[0].mxu0
      %814 = vdwg.mxu0
      %815 = vst.msk [vmem:[%s241] sm:$0xff] %vm249, %v807
      %vm816 = vcmask 253952
      %817 = vst.msk [vmem:[%s241 + $0x8] sm:$0x1] %vm816, %v812
      %p818 = scmp.lt.s32.totalorder %s16, 1
      %s819 = scalar_select %p818, %s16, 1
      %s820 = smul.addr %s819, 2
      %s821 = smul.addr %s820, 8
      %s822 = scalar_lea.vmem %s5, %s821
      // Predicated region
      $region41: #{query_attention_forward.1} parent=39 // pred_check
        %p823 = pneg %p149
      $region42: #{query_attention_forward.1} parent=39 // pred_check_branch
        %825 = sbr.rel (%p823) target = $region44
      $region43: #{query_attention_forward.1} parent=39 // pred_region
        _
      $region44: #{query_attention_forward.1} parent=39 // pred_fallthru
        _
    $region40: #{query_attention_forward.1} parent=5 // pred_fallthru
      _
    %p826 = scmp.le.s32.totalorder 2, %s11
    // Predicated region
    $region45: #{query_attention_forward.1} parent=5 // pred_check
      %p827 = pneg %p826
    $region46: #{query_attention_forward.1} parent=5 // pred_check_branch
      %829 = sbr.rel (%p827) target = $region48
    $region47: #{query_attention_forward.1} parent=5 // pred_region
      %s830 = ssub.s32 %s11, 2
      // Predicated region
      $region49: #{query_attention_forward.1} parent=47 // pred_check
        %p831 = pneg %p155
      $region50: #{query_attention_forward.1} parent=47 // pred_check_branch
        %833 = sbr.rel (%p831) target = $region52
      $region51: #{query_attention_forward.1} parent=47 // pred_region
        %p834 = scmp.lt.s32.totalorder %s17, 1
        %s835 = scalar_select %p834, %s17, 1
        %s836 = smul.addr %s835, 2
        %s837 = smul.addr %s836, 8
        %s838 = scalar_lea.vmem %s5, %s837
      $region52: #{query_attention_forward.1} parent=47 // pred_fallthru
        _
    $region48: #{query_attention_forward.1} parent=5 // pred_fallthru
      _
  $region6: #{query_attention_forward.1} parent=0 // loop_footer
    %s15 = sadd.s32 1, %s11
  $region7: #{query_attention_forward.1} parent=0 // loop_footer_branch
    %10 = sbr.rel target = $region3
  $region8: #{query_attention_forward.1} parent=0 // loop_exit
    _

</llo_original>
